<compile_context>
chip_gen: v5e
topology: v5e:2x2
jax: 0.10.0
libtpu: 0.0.40
codegen_flags: <defaults>
</compile_context>

<pallas_src>
import functools

import jax
import jax.numpy as jnp
import numpy as np
from jax import lax
from jax.experimental import pallas as pl
from jax.experimental.pallas import tpu as pltpu


def _gaussian_1d_np(sz: int, sigma: float) -> np.ndarray:
    """Separable 1-D factor of the module's Gaussian weight (f64, like the torch init)."""
    r = np.arange(2 * sz + 1, dtype=np.float64) - sz
    return np.exp(-(r * r) / 2.0 / (sigma ** 2))


def _band_matrix_np(L: int, g: np.ndarray, sz: int) -> np.ndarray:
    """(L, L) Toeplitz band: M[i, j] = g[j - i + sz] for |j - i| <= sz, else 0.
    out = M @ x  ==  1-D cross-correlation of x with g under 'same' zero padding."""
    i = np.arange(L)[:, None]
    j = np.arange(L)[None, :]
    d = j - i
    return np.where(np.abs(d) <= sz, g[np.clip(d + sz, 0, 2 * sz)], 0.0)


def make_gaussian_weight(sz: int, sigma: float = 1.5) -> jnp.ndarray:
    """Full 3-D weight, identical formula to the PyTorch module (reference check only)."""
    K = 2 * sz + 1
    r = np.arange(K, dtype=np.float64) - sz
    dz, dy, dx = np.meshgrid(r, r, r, indexing="ij")
    w = np.exp(-(dz * dz + dy * dy + dx * dx) / 2.0 / (sigma ** 2))
    return jnp.asarray(w, dtype=jnp.float32)


def _gauss_kernel(a_ref, x_ref, bw_ref, o_ref, t_ref):
    # a_ref : (TM, DH)   bf16  row slab of kron(band_D, band_H)
    # x_ref : (B, DH, W) f32   B batch elements per grid step
    # bw_ref: (W, W)     bf16  W-axis band matrix (pre-transposed; Gaussian is symmetric)
    # o_ref : (B, TM, W) f32
    # t_ref : (B, TM, W) f32   VMEM scratch holding the D/H-pass result
    a = a_ref[...]
    B, TM, W = t_ref.shape
    # D & H passes: one MXU matmul per batch element over the flattened (D, H) index.
    for b in range(B):  # B is 1 or 2 (static)
        xb = x_ref[b].astype(jnp.bfloat16)
        t_ref[b] = jnp.dot(a, xb, preferred_element_type=jnp.float32)
    # W (lane) pass: stack batch elements along rows so M = B*TM better fills the 256-wide
    # MXU; the (B, TM, W) -> (B*TM, W) leading-axis merge is layout-free (W stays on lanes).
    t = t_ref[...].reshape(B * TM, W).astype(jnp.bfloat16)
    y = jnp.dot(t, bw_ref[...], preferred_element_type=jnp.float32)
    o_ref[...] = y.reshape(B, TM, W).astype(o_ref.dtype)


def _choose_blocking(N: int, DH: int) -> tuple:
    """Pick (batch-per-step B, D*H row tile TM).

    B=2 amortizes the ~0.35us per-grid-step overhead and doubles the W-pass M.  When the
    batch axis yields only one grid step, split D*H into two row tiles so both v7x
    TensorCores are fed (the extra 'parallel' axis is neutral on single-TC v5e/v6e)."""
    B = 2 if (N >= 2 and N % 2 == 0) else 1
    if (N // B) >= 2 or DH % 32 != 0:
        TM = DH
    else:
        TM = DH // 2  # multiple of 16 -> legal bf16 sublane tiling for the A row slab
    return B, TM


@functools.partial(jax.jit, static_argnames=("sz", "sigma"))
def gauss_smooth(x: jnp.ndarray, sz: int, sigma: float = 1.5) -> jnp.ndarray:
    """x: (N, 1, D, H, W) float32 -> (N, 1, D, H, W). Matches the PyTorch module forward."""
    N, C, D, H, W = x.shape
    assert C == 1, "GaussSmooth has in_channels=1"
    DH = D * H

    # Band matrices built in numpy at trace time -> true bf16 compile-time constants.
    g = _gaussian_1d_np(sz, sigma)
    A = jnp.asarray(np.kron(_band_matrix_np(D, g, sz), _band_matrix_np(H, g, sz)),
                    dtype=jnp.bfloat16)                                   # (DH, DH)
    BW = jnp.asarray(_band_matrix_np(W, g, sz).T, dtype=jnp.bfloat16)     # (W, W)
    # TODO(synk): replace the kron with separate D- and H-band passes once D*H >~ 512.

    B, TM = _choose_blocking(N, DH)
    grid = (N // B, DH // TM)

    xf = x.reshape(N, DH, W)  # free reshape; W stays on the lane axis

    flops = N * (2 * DH * DH * W + 2 * DH * W * W)
    bytes_accessed = (N * DH * W * 4) * 2 + DH * DH * 2 * grid[1] + W * W * 2

    out = pl.pallas_call(
        _gauss_kernel,
        out_shape=jax.ShapeDtypeStruct((N, DH, W), x.dtype),
        grid=grid,
        in_specs=[
            pl.BlockSpec((TM, DH), lambda n, m: (m, 0)),        # A row slab (bf16)
            pl.BlockSpec((B, DH, W), lambda n, m: (n, 0, 0)),   # x, B elements / step
            pl.BlockSpec((W, W), lambda n, m: (0, 0)),          # BW (grid-invariant)
        ],
        out_specs=pl.BlockSpec((B, TM, W), lambda n, m: (n, m, 0)),
        scratch_shapes=[pltpu.VMEM((B, TM, W), jnp.float32)],
        compiler_params=pltpu.CompilerParams(
            dimension_semantics=("parallel", "parallel"),  # batch x row-tile across TCs
        ),
        cost_estimate=pl.CostEstimate(
            flops=flops, transcendentals=0, bytes_accessed=bytes_accessed),
    )(A, xf, BW)

    return out.reshape(N, 1, D, H, W)


def gauss_smooth_ref(x: jnp.ndarray, weight: jnp.ndarray) -> jnp.ndarray:
    """Plain-JAX f32 reference: cross-correlation, same semantics as torch Conv3d."""
    return lax.conv_general_dilated(
        x, weight[None, None],                    # NCDHW, OIDHW
        window_strides=(1, 1, 1), padding="SAME",
        dimension_numbers=("NCDHW", "OIDHW", "NCDHW"),
        precision=lax.Precision.HIGHEST,
    )


if __name__ == "__main__":
    # Module default sz=5 (11x11x11 kernel).  Small volume sized so the matmuls are
    # MXU-friendly: D*H = 128 rows, W = 128 lanes.
    N, D, H, W = 2, 8, 16, 128
    sz = 5

    key = jax.random.PRNGKey(0)
    x = jax.random.normal(key, (N, 1, D, H, W), dtype=jnp.float32)

    y = jax.block_until_ready(gauss_smooth(x, sz=sz))
    y_ref = jax.block_until_ready(gauss_smooth_ref(x, make_gaussian_weight(sz)))

    assert y.shape == (N, 1, D, H, W) and y.dtype == jnp.float32
    # bf16 MXU path: expected error is ~0.3% of the output dynamic range (the unnormalized
    # Gaussian sums to ~53, outputs reach ~|16| here); assert < 2% of range, which still
    # catches any padding/indexing/layout bug (those produce O(1) relative errors).
    err = float(jnp.max(jnp.abs(y - y_ref)))
    scale = float(jnp.max(jnp.abs(y_ref)))
    assert err <= 2e-2 * scale, (err, scale)

    print("KERNEL_OK")
</pallas_src>

<mosaic_0001>
module attributes {stable_mosaic.version = 11 : i64} {
  func.func @_gauss_kernel(%arg0: i32, %arg1: i32, %arg2: memref<64x128xbf16, #tpu.memory_space<vmem>>, %arg3: memref<2x128x128xf32, #tpu.memory_space<vmem>>, %arg4: memref<128x128xbf16, #tpu.memory_space<vmem>>, %arg5: memref<2x64x128xf32, #tpu.memory_space<vmem>>, %arg6: memref<2x64x128xf32, #tpu.memory_space<vmem>>) attributes {dimension_semantics = [#tpu.dimension_semantics<parallel>, #tpu.dimension_semantics<parallel>], iteration_bounds = array<i64: 1, 2>, scalar_prefetch = 0 : i64, scratch_operands = 1 : i64, tpu.core_type = #tpu.core_type<tc>, window_params = [{transform_indices = @transform_0, window_bounds = array<i64: 64, 128>}, {transform_indices = @transform_1, window_bounds = array<i64: 2, 128, 128>}, {pipeline_mode = #tpu.pipeline_mode<synchronous>, transform_indices = @transform_2, window_bounds = array<i64: 128, 128>}, {transform_indices = @transform_3, window_bounds = array<i64: 2, 64, 128>}]} {
    %c0 = arith.constant 0 : index
    %c0_0 = arith.constant 0 : index
    %0 = vector.load %arg2[%c0, %c0_0] : memref<64x128xbf16, #tpu.memory_space<vmem>>, vector<64x128xbf16>
    %c0_1 = arith.constant 0 : index
    %c0_2 = arith.constant 0 : index
    %c0_3 = arith.constant 0 : index
    %1 = vector.load %arg3[%c0_1, %c0_2, %c0_3] : memref<2x128x128xf32, #tpu.memory_space<vmem>>, vector<1x128x128xf32>
    %2 = vector.shape_cast %1 : vector<1x128x128xf32> to vector<128x128xf32>
    %3 = arith.truncf %2 : vector<128x128xf32> to vector<128x128xbf16>
    %cst = arith.constant dense<0.000000e+00> : vector<64x128xf32>
    %4 = tpu.matmul %0, %3, %cst {dimension_numbers = #tpu.dot_dimension_numbers<[1], [0], [0], [1], [0, 0, 1, 1], [], []>} : vector<64x128xbf16>, vector<128x128xbf16>, vector<64x128xf32> -> vector<64x128xf32>
    %c0_4 = arith.constant 0 : index
    %c0_5 = arith.constant 0 : index
    %c0_6 = arith.constant 0 : index
    %5 = vector.load %arg6[%c0_4, %c0_5, %c0_6] : memref<2x64x128xf32, #tpu.memory_space<vmem>>, vector<1x64x128xf32>
    %6 = vector.shape_cast %5 : vector<1x64x128xf32> to vector<64x128xf32>
    %7 = vector.shape_cast %4 : vector<64x128xf32> to vector<1x64x128xf32>
    tpu.vector_store %arg6[%c0_4, %c0_5, %c0_6], %7 {strides = array<i32>} : memref<2x64x128xf32, #tpu.memory_space<vmem>>, vector<1x64x128xf32>,
    %c1 = arith.constant 1 : index
    %c0_7 = arith.constant 0 : index
    %c0_8 = arith.constant 0 : index
    %8 = vector.load %arg3[%c1, %c0_7, %c0_8] : memref<2x128x128xf32, #tpu.memory_space<vmem>>, vector<1x128x128xf32>
    %9 = vector.shape_cast %8 : vector<1x128x128xf32> to vector<128x128xf32>
    %10 = arith.truncf %9 : vector<128x128xf32> to vector<128x128xbf16>
    %cst_9 = arith.constant dense<0.000000e+00> : vector<64x128xf32>
    %11 = tpu.matmul %0, %10, %cst_9 {dimension_numbers = #tpu.dot_dimension_numbers<[1], [0], [0], [1], [0, 0, 1, 1], [], []>} : vector<64x128xbf16>, vector<128x128xbf16>, vector<64x128xf32> -> vector<64x128xf32>
    %c1_10 = arith.constant 1 : index
    %c0_11 = arith.constant 0 : index
    %c0_12 = arith.constant 0 : index
    %12 = vector.load %arg6[%c1_10, %c0_11, %c0_12] : memref<2x64x128xf32, #tpu.memory_space<vmem>>, vector<1x64x128xf32>
    %13 = vector.shape_cast %12 : vector<1x64x128xf32> to vector<64x128xf32>
    %14 = vector.shape_cast %11 : vector<64x128xf32> to vector<1x64x128xf32>
    tpu.vector_store %arg6[%c1_10, %c0_11, %c0_12], %14 {strides = array<i32>} : memref<2x64x128xf32, #tpu.memory_space<vmem>>, vector<1x64x128xf32>,
    %c0_13 = arith.constant 0 : index
    %c0_14 = arith.constant 0 : index
    %c0_15 = arith.constant 0 : index
    %15 = vector.load %arg6[%c0_13, %c0_14, %c0_15] : memref<2x64x128xf32, #tpu.memory_space<vmem>>, vector<2x64x128xf32>
    %16 = vector.shape_cast %15 : vector<2x64x128xf32> to vector<128x128xf32>
    %17 = arith.truncf %16 : vector<128x128xf32> to vector<128x128xbf16>
    %c0_16 = arith.constant 0 : index
    %c0_17 = arith.constant 0 : index
    %18 = vector.load %arg4[%c0_16, %c0_17] : memref<128x128xbf16, #tpu.memory_space<vmem>>, vector<128x128xbf16>
    %cst_18 = arith.constant dense<0.000000e+00> : vector<128x128xf32>
    %19 = tpu.matmul %17, %18, %cst_18 {dimension_numbers = #tpu.dot_dimension_numbers<[1], [0], [0], [1], [0, 0, 1, 1], [], []>} : vector<128x128xbf16>, vector<128x128xbf16>, vector<128x128xf32> -> vector<128x128xf32>
    %20 = vector.shape_cast %19 : vector<128x128xf32> to vector<2x64x128xf32>
    %c0_19 = arith.constant 0 : index
    %c0_20 = arith.constant 0 : index
    %c0_21 = arith.constant 0 : index
    %21 = vector.load %arg5[%c0_19, %c0_20, %c0_21] : memref<2x64x128xf32, #tpu.memory_space<vmem>>, vector<2x64x128xf32>
    tpu.vector_store %arg5[%c0_19, %c0_20, %c0_21], %20 {strides = array<i32>} : memref<2x64x128xf32, #tpu.memory_space<vmem>>, vector<2x64x128xf32>,
    return
  }
  func.func @transform_0(%arg0: i32, %arg1: i32) -> (i32, i32) {
    %c0_i32 = arith.constant 0 : i32
    %c0_i32_0 = arith.constant 0 : i32
    return %arg1, %c0_i32 : i32, i32
  }
  func.func @transform_1(%arg0: i32, %arg1: i32) -> (i32, i32, i32) {
    %c0_i32 = arith.constant 0 : i32
    %c0_i32_0 = arith.constant 0 : i32
    %c0_i32_1 = arith.constant 0 : i32
    return %arg0, %c0_i32, %c0_i32_0 : i32, i32, i32
  }
  func.func @transform_2(%arg0: i32, %arg1: i32) -> (i32, i32) {
    %c0_i32 = arith.constant 0 : i32
    %c0_i32_0 = arith.constant 0 : i32
    %c0_i32_1 = arith.constant 0 : i32
    return %c0_i32, %c0_i32_0 : i32, i32
  }
  func.func @transform_3(%arg0: i32, %arg1: i32) -> (i32, i32, i32) {
    %c0_i32 = arith.constant 0 : i32
    %c0_i32_0 = arith.constant 0 : i32
    return %arg0, %arg1, %c0_i32 : i32, i32, i32
  }
}

</mosaic_0001>

<llo_original>
// kernel: gauss_smooth.1
$region0: #{gauss_smooth.1}
  #allocation0 [shape = 'u32[]', space=smem, size = 0x4, offset = 0x4, fixed_abs, tag = 'smem constant byte address 0x4 - core index']
  #allocation1 [shape = 'u32[72,128]{1,0:T(1,128)}', space=vmem, size = 0x9000, scoped, tag = 'internal scratch']
  #allocation2 [shape = 'f32[2,64,128]{2,1,0:T(8,128)}', space=vmem, size = 0x10000, scoped, tag = 'scratch operand']
  #allocation10 [shape = 's32[]', space=sflag, size = 0x4, offset = 0, fixed_abs, tag = 'sflag constant byte address 0x0 - dummy sync flag']
  %s0 = inlined_call_operand.hbm [shape: bf16[128,128], index: 0, kind: input, shape index: {}]
  %s1 = inlined_call_operand.hbm [shape: f32[2,128,128], index: 1, kind: input, shape index: {}]
  %s2 = inlined_call_operand.hbm [shape: bf16[128,128], index: 2, kind: input, shape index: {}]
  %s3 = inlined_call_operand.hbm [shape: f32[2,128,128], index: 3, kind: output, shape index: {}]
  %s4 = sld [smem:[#allocation0]]
  $region57: #{gauss_smooth.1} parent=0
    _
  %s6 = ssub.s32 1, %s4
  %s7 = scalar_select 0, %s6, %s4
  $region1: #{gauss_smooth.1} parent=0
    #allocation3 [shape = 'u8[32768]{0}', space=vmem, size = 0x8000, scoped, tag = 'input window, operand 0']
    #allocation4 [shape = 's32[2]{0}', space=sflag, size = 0x8, scoped, tag = 'scoped memory for gauss_smooth.1']
    #allocation5 [shape = 's32[2]{0}', space=sflag, size = 0x8, scoped, tag = 'scoped memory for gauss_smooth.1']
    #allocation6 [shape = 'u8[131072]{0}', space=vmem, size = 0x20000, scoped, tag = 'input window, operand 1, single buffered']
    #allocation7 [shape = 's32[1]{0}', space=sflag, size = 0x4, scoped, tag = 'scoped memory for gauss_smooth.1']
    #allocation8 [shape = 'u8[32768]{0}', space=vmem, size = 0x8000, scoped, tag = 'input window, operand 2, single buffered']
    #allocation9 [shape = 'u8[131072]{0}', space=vmem, size = 0x20000, scoped, tag = 'output window, operand 0']
    %8 = vsyncpa [#allocation4], 0
    %s9 = scalar_lea.sflag [#allocation4], 1
    %10 = vsyncpa %s9, 0
    %11 = vsyncpa [#allocation7], 0
    %12 = vsyncpa [#allocation5], 0
    %s13 = scalar_lea.sflag [#allocation5], 1
    %14 = vsyncpa %s13, 0
    loop: start=0, step=1, limit=4
    $region2: #{gauss_smooth.1} parent=1 // loop_pre_header
      _
    $region3: #{gauss_smooth.1} parent=1 // loop_header
      %s16 = sphi 0, %s20
      %p17 = scmp.ge.s32.totalorder %s16, 4
      %s23 = sphi 0, %s35
      %s24 = sphi 0, %s31
      %s25 = sphi 0, %s23
      %s26 = sphi 0, %s24
      %s27 = sphi 0, %s25
      %s28 = sphi 0, %s26
      %s38 = sphi 0, %s40
      %s41 = sphi 0, %s38
      %s42 = sphi 0, %s41
      %s58 = sphi 0, %s42
      %s64 = sphi 0, %s66
      %s67 = sphi 0, %s64
      %s68 = sphi 0, %s67
      %s84 = sphi 0, %s68
      %s88 = sphi 0, %s88
      %s90 = sphi 0, %s88
      %s91 = sphi 0, %s90
      %s105 = sphi 0, %s91
      %s113 = sphi 0, %s115
      %s116 = sphi 0, %s113
      %s117 = sphi 0, %s116
      %s133 = sphi 0, %s117
    $region4: #{gauss_smooth.1} parent=1 // loop_header_branch
      %19 = sbr.rel (%p17) target = $region8
    $region5: #{gauss_smooth.1} parent=1 // loop_body
      %s21 = ssub.s32 %s16, 1
      %s22 = ssub.s32 %s16, 2
      %s29 = sadd.s32 1, %s24
      %p30 = scmp.ge.s32.totalorder %s29, 2
      %s31 = scalar_select %p30, 0, %s29
      %s32 = sadd.s32 1, %s23
      %s33 = scalar_select %p30, %s32, %s23
      %p34 = scmp.ge.s32.totalorder %s33, 1
      %s35 = scalar_select %p34, 0, %s33
      %s36 = ssub.s32 %s24, %s31
      %p37 = scmp.eq.s32.totalorder %s36, 0
      %s39 = sadd.s32 %s38, 1
      %s40 = scalar_select %p37, %s38, %s39
      %p43 = pneg %p37
      %p44 = scmp.eq.s32.totalorder %s16, 1
      %p45 = por %p43, %p44
      %p46 = scmp.ne.s32.totalorder %s38, %s41
      %p47 = scmp.eq.s32.totalorder %s16, 0
      %p48 = por %p46, %p47
      %p49 = scmp.ne.s32.totalorder %s38, %s41
      %p50 = scmp.eq.s32.totalorder %s21, 1
      %p51 = por %p49, %p50
      %p52 = scmp.ne.s32.totalorder %s41, %s42
      %p53 = scmp.eq.s32.totalorder %s21, 0
      %p54 = por %p52, %p53
      %p55 = scmp.ne.s32.totalorder %s41, %s42
      %p56 = scmp.eq.s32.totalorder %s22, 1
      %p57 = por %p55, %p56
      %p59 = scmp.ne.s32.totalorder %s42, %s58
      %p60 = scmp.eq.s32.totalorder %s22, 0
      %p61 = por %p59, %p60
      %s62 = ssub.s32 %s23, %s35
      %p63 = scmp.eq.s32.totalorder %s62, 0
      %s65 = sadd.s32 %s64, 1
      %s66 = scalar_select %p63, %s64, %s65
      %p69 = pneg %p63
      %p70 = scmp.eq.s32.totalorder %s16, 1
      %p71 = por %p69, %p70
      %p72 = scmp.ne.s32.totalorder %s64, %s67
      %p73 = scmp.eq.s32.totalorder %s16, 0
      %p74 = por %p72, %p73
      %p75 = scmp.ne.s32.totalorder %s64, %s67
      %p76 = scmp.eq.s32.totalorder %s21, 1
      %p77 = por %p75, %p76
      %p78 = scmp.ne.s32.totalorder %s67, %s68
      %p79 = scmp.eq.s32.totalorder %s21, 0
      %p80 = por %p78, %p79
      %p81 = scmp.ne.s32.totalorder %s67, %s68
      %p82 = scmp.eq.s32.totalorder %s22, 1
      %p83 = por %p81, %p82
      %p85 = scmp.ne.s32.totalorder %s68, %s84
      %p86 = scmp.eq.s32.totalorder %s22, 0
      %p87 = por %p85, %p86
      %s89 = sadd.s32 %s88, 1
      %p92 = scmp.eq.s32.totalorder %s16, 1
      %p93 = scmp.ne.s32.totalorder %s88, %s90
      %p94 = scmp.eq.s32.totalorder %s16, 0
      %p95 = por %p93, %p94
      %p96 = scmp.ne.s32.totalorder %s88, %s90
      %p97 = scmp.eq.s32.totalorder %s21, 1
      %p98 = por %p96, %p97
      %p99 = scmp.ne.s32.totalorder %s90, %s91
      %p100 = scmp.eq.s32.totalorder %s21, 0
      %p101 = por %p99, %p100
      %p102 = scmp.ne.s32.totalorder %s90, %s91
      %p103 = scmp.eq.s32.totalorder %s22, 1
      %p104 = por %p102, %p103
      %p106 = scmp.ne.s32.totalorder %s91, %s105
      %p107 = scmp.eq.s32.totalorder %s22, 0
      %p108 = por %p106, %p107
      %s109 = ssub.s32 %s23, %s35
      %s110 = ssub.s32 %s24, %s31
      %s111 = sor.u32 %s109, %s110
      %p112 = scmp.eq.s32.totalorder %s111, 0
      %s114 = sadd.s32 %s113, 1
      %s115 = scalar_select %p112, %s113, %s114
      %p118 = pneg %p112
      %p119 = scmp.eq.s32.totalorder %s16, 1
      %p120 = por %p118, %p119
      %p121 = scmp.ne.s32.totalorder %s113, %s116
      %p122 = scmp.eq.s32.totalorder %s16, 0
      %p123 = por %p121, %p122
      %p124 = scmp.ne.s32.totalorder %s113, %s116
      %p125 = scmp.eq.s32.totalorder %s21, 1
      %p126 = por %p124, %p125
      %p127 = scmp.ne.s32.totalorder %s116, %s117
      %p128 = scmp.eq.s32.totalorder %s21, 0
      %p129 = por %p127, %p128
      %p130 = scmp.ne.s32.totalorder %s116, %s117
      %p131 = scmp.eq.s32.totalorder %s22, 1
      %p132 = por %p130, %p131
      %p134 = scmp.ne.s32.totalorder %s117, %s133
      %p135 = scmp.eq.s32.totalorder %s22, 0
      %p136 = por %p134, %p135
      %p137 = scmp.le.s32.totalorder 1, %s16
      %p138 = scmp.lt.s32.totalorder %s16, 3
      %p139 = pnand %p137, %p138
      %p140 = pneg %p139
      // Predicated region
      $region9: #{gauss_smooth.1} parent=5 // pred_check
        _
      $region10: #{gauss_smooth.1} parent=5 // pred_check_branch
        %142 = sbr.rel (%p139) target = $region12
      $region11: #{gauss_smooth.1} parent=5 // pred_region
        %s143 = ssub.s32 %s16, 1
        // Predicated region
        $region13: #{gauss_smooth.1} parent=11 // pred_check
          %p144 = pneg %p80
        $region14: #{gauss_smooth.1} parent=11 // pred_check_branch
          %146 = sbr.rel (%p144) target = $region16
        $region15: #{gauss_smooth.1} parent=11 // pred_region
          %s147 = smul.u32 2, %s25
          %149 = vsyncadd [#allocation7], 0
          %s150 = smul.addr %s147, 16
          %s151 = smul.addr %s150, 8
          %s152 = scalar_lea.hbm %s1, %s151
          %s153 = sshll.u32 %s152, 4
          %s154 = int_to_ptr.hbm [resolvable:$true] %s153
          %s155 = sshll.u32 [#allocation6], 4
          %s156 = int_to_ptr.vmem [resolvable:$true] %s155
          %161 = dma.hbm_to_vmem [thread:$0]  %s154, 4096, %s156, [#allocation7], 128, 128, 8
        $region16: #{gauss_smooth.1} parent=11 // pred_fallthru
          _
        // Predicated region
        $region17: #{gauss_smooth.1} parent=11 // pred_check
          %p162 = pneg %p101
        $region18: #{gauss_smooth.1} parent=11 // pred_check_branch
          %164 = sbr.rel (%p162) target = $region20
        $region19: #{gauss_smooth.1} parent=11 // pred_region
          %166 = vsyncadd [#allocation7], 0
          %s167 = sshll.u32 %s2, 4
          %s168 = int_to_ptr.hbm [resolvable:$true] %s167
          %s169 = sshll.u32 [#allocation8], 4
          %s170 = int_to_ptr.vmem [resolvable:$true] %s169
          %175 = dma.hbm_to_vmem [thread:$0]  %s168, 1024, %s170, [#allocation7], 64, 64, 4
        $region20: #{gauss_smooth.1} parent=11 // pred_fallthru
          _
      $region12: #{gauss_smooth.1} parent=5 // pred_fallthru
        _
      %p176 = scmp.lt.s32.totalorder %s16, 2
      // Predicated region
      $region21: #{gauss_smooth.1} parent=5 // pred_check
        %p177 = pneg %p176
      $region22: #{gauss_smooth.1} parent=5 // pred_check_branch
        %179 = sbr.rel (%p177) target = $region24
      $region23: #{gauss_smooth.1} parent=5 // pred_region
        // Predicated region
        $region25: #{gauss_smooth.1} parent=23 // pred_check
          %p180 = pneg %p48
        $region26: #{gauss_smooth.1} parent=23 // pred_check_branch
          %182 = sbr.rel (%p180) target = $region28
        $region27: #{gauss_smooth.1} parent=23 // pred_region
          %s183 = sand.u32 %s38, 1
          %s184 = scalar_lea.sflag [#allocation4], %s183
          %s185 = sand.u32 %s38, 1
          %s186 = smul.addr %s185, 32
          %s187 = scalar_lea.vmem [#allocation3], %s186
          %s188 = smul.u32 8, %s24
          %190 = vsyncadd %s184, 0
          %s191 = smul.addr %s188, 4
          %s192 = scalar_lea.hbm %s0, %s191
          %s193 = sshll.u32 %s192, 4
          %s194 = int_to_ptr.hbm [resolvable:$true] %s193
          %s195 = sshll.u32 %s187, 4
          %s196 = int_to_ptr.vmem [resolvable:$true] %s195
          %201 = dma.hbm_to_vmem [thread:$0]  %s194, 512, %s196, %s184, 64, 64, 4
        $region28: #{gauss_smooth.1} parent=23 // pred_fallthru
          _
      $region24: #{gauss_smooth.1} parent=5 // pred_fallthru
        _
      %p202 = scmp.le.s32.totalorder 1, %s16
      %p203 = scmp.lt.s32.totalorder %s16, 3
      %p204 = pnand %p202, %p203
      %p205 = pneg %p204
      // Predicated region
      $region29: #{gauss_smooth.1} parent=5 // pred_check
        _
      $region30: #{gauss_smooth.1} parent=5 // pred_check_branch
        %207 = sbr.rel (%p204) target = $region32
      $region31: #{gauss_smooth.1} parent=5 // pred_region
        %s208 = ssub.s32 %s16, 1
        %s209 = sand.u32 %s41, 1
        %s210 = scalar_lea.sflag [#allocation4], %s209
        %s211 = sand.u32 %s41, 1
        %s212 = smul.addr %s211, 32
        %s213 = scalar_lea.vmem [#allocation3], %s212
        // Predicated region
        $region33: #{gauss_smooth.1} parent=31 // pred_check
          %p214 = pneg %p54
        $region34: #{gauss_smooth.1} parent=31 // pred_check_branch
          %216 = sbr.rel (%p214) target = $region36
        $region35: #{gauss_smooth.1} parent=31 // pred_region
          %218 = dma.done %s210, 512
        $region36: #{gauss_smooth.1} parent=31 // pred_fallthru
          _
        // Predicated region
        $region37: #{gauss_smooth.1} parent=31 // pred_check
          %p219 = pneg %p80
        $region38: #{gauss_smooth.1} parent=31 // pred_check_branch
          %221 = sbr.rel (%p219) target = $region40
        $region39: #{gauss_smooth.1} parent=31 // pred_region
          %223 = dma.done [#allocation7], 4096
        $region40: #{gauss_smooth.1} parent=31 // pred_fallthru
          _
        // Predicated region
        $region41: #{gauss_smooth.1} parent=31 // pred_check
          %p224 = pneg %p101
        $region42: #{gauss_smooth.1} parent=31 // pred_check_branch
          %226 = sbr.rel (%p224) target = $region44
        $region43: #{gauss_smooth.1} parent=31 // pred_region
          %228 = dma.done [#allocation7], 1024
        $region44: #{gauss_smooth.1} parent=31 // pred_fallthru
          _
        %s229 = sand.u32 %s41, 1
        %s230 = scalar_lea.sflag [#allocation4], %s229
        %s231 = sand.u32 %s41, 1
        %s232 = smul.addr %s231, 32
        %s233 = scalar_lea.vmem [#allocation3], %s232
        %p234 = pneg %p54
        %p235 = pneg %p51
        %p236 = pneg %p80
        %p237 = pneg %p77
        %p238 = pneg %p101
        %p239 = pneg %p98
        %p240 = pneg %p129
        %p241 = pneg %p126
        %s242 = sand.u32 %s116, 1
        %s243 = scalar_lea.sflag [#allocation5], %s242
        %s244 = sand.u32 %s116, 1
        %s245 = smul.addr %s244, 128
        %s246 = scalar_lea.vmem [#allocation9], %s245
        %s247 = smul.u32 8, %s26
        %s248 = smul.u32 2, %s25
        %s249 = smul.u32 2, %s25
        %s250 = smul.u32 8, %s26
        %v251 = vld [vmem:[%s213] sm:$0xf]
        %v252 = vld [vmem:[%s213 + $0x4] sm:$0xf]
        %v253 = vld [vmem:[%s213 + $0x8] sm:$0xf]
        %v254 = vld [vmem:[%s213 + $0xc] sm:$0xf]
        %v255 = vld [vmem:[%s213 + $0x10] sm:$0xf]
        %v256 = vld [vmem:[%s213 + $0x14] sm:$0xf]
        %v257 = vld [vmem:[%s213 + $0x18] sm:$0xf]
        %v258 = vld [vmem:[%s213 + $0x1c] sm:$0xf]
        %v259 = vld [vmem:[#allocation6] sm:$0xff]
        %v260 = vld [vmem:[#allocation6 + $0x8] sm:$0xff]
        %v261 = vld [vmem:[#allocation6 + $0x10] sm:$0xff]
        %v262 = vld [vmem:[#allocation6 + $0x18] sm:$0xff]
        %v263 = vld [vmem:[#allocation6 + $0x20] sm:$0xff]
        %v264 = vld [vmem:[#allocation6 + $0x28] sm:$0xff]
        %v265 = vld [vmem:[#allocation6 + $0x30] sm:$0xff]
        %v266 = vld [vmem:[#allocation6 + $0x38] sm:$0xff]
        %v267 = vld [vmem:[#allocation6 + $0x40] sm:$0xff]
        %v268 = vld [vmem:[#allocation6 + $0x48] sm:$0xff]
        %v269 = vld [vmem:[#allocation6 + $0x50] sm:$0xff]
        %v270 = vld [vmem:[#allocation6 + $0x58] sm:$0xff]
        %v271 = vld [vmem:[#allocation6 + $0x60] sm:$0xff]
        %v272 = vld [vmem:[#allocation6 + $0x68] sm:$0xff]
        %v273 = vld [vmem:[#allocation6 + $0x70] sm:$0xff]
        %v274 = vld [vmem:[#allocation6 + $0x78] sm:$0xff]
        %v275 = vpack.c.bf16 %v260, %v259
        %v276 = vpack.c.bf16 %v262, %v261
        %v277 = vpack.c.bf16 %v264, %v263
        %v278 = vpack.c.bf16 %v266, %v265
        %v279 = vpack.c.bf16 %v268, %v267
        %v280 = vpack.c.bf16 %v270, %v269
        %v281 = vpack.c.bf16 %v272, %v271
        %v282 = vpack.c.bf16 %v274, %v273
        %v291 = vunpack.c.l.b16 %v251
        %v292 = vunpack.c.l.b16 %v252
        %v293 = vunpack.c.l.b16 %v253
        %v294 = vunpack.c.l.b16 %v254
        %v295 = vunpack.c.l.b16 %v255
        %v296 = vunpack.c.l.b16 %v256
        %v297 = vunpack.c.l.b16 %v257
        %v298 = vunpack.c.l.b16 %v258
        %v299 = vpack.c.b16 %v292, %v291
        %v300 = vpack.c.b16 %v294, %v293
        %v301 = vpack.c.b16 %v296, %v295
        %v302 = vpack.c.b16 %v298, %v297
        %307 = vmatpush.bf16.msra.mxu0 %v282
        %308 = vmatpush.bf16.msra.mxu0 %v281
        %309 = vmatpush.bf16.msra.mxu0 %v280
        %310 = vmatpush.bf16.msra.mxu0 %v279
        %311 = vmatpush.bf16.msra.mxu0 %v278
        %312 = vmatpush.bf16.msra.mxu0 %v277
        %313 = vmatpush.bf16.msra.mxu0 %v276
        %314 = vmatpush.bf16.msra.mxu0 %v275
        %315 = vmatmul.bf16.gmra.mxu0 %v299
        %v316 = vpop.f32.mrf.mxu0
        %v317 = vadd.f32 0.0, %v316
        %v318 = vpop.f32.mrf.mxu0
        %v319 = vadd.f32 0.0, %v318
        %320 = vmatmul.bf16.gmra.mxu0 %v300
        %v321 = vpop.f32.mrf.mxu0
        %v322 = vadd.f32 0.0, %v321
        %v323 = vpop.f32.mrf.mxu0
        %v324 = vadd.f32 0.0, %v323
        %325 = vmatmul.bf16.gmra.mxu0 %v301
        %v326 = vpop.f32.mrf.mxu0
        %v327 = vadd.f32 0.0, %v326
        %v328 = vpop.f32.mrf.mxu0
        %v329 = vadd.f32 0.0, %v328
        %330 = vmatmul.bf16.gmra.mxu0 %v302
        %v331 = vpop.f32.mrf.mxu0
        %v332 = vadd.f32 0.0, %v331
        %v333 = vpop.f32.mrf.mxu0
        %v334 = vadd.f32 0.0, %v333
        %335 = vdwg.mxu0
        %336 = vst [vmem:[#allocation2] sm:$0xff] %v317
        %337 = vst [vmem:[#allocation2 + $0x8] sm:$0xff] %v319
        %338 = vst [vmem:[#allocation2 + $0x10] sm:$0xff] %v322
        %339 = vst [vmem:[#allocation2 + $0x18] sm:$0xff] %v324
        %340 = vst [vmem:[#allocation2 + $0x20] sm:$0xff] %v327
        %341 = vst [vmem:[#allocation2 + $0x28] sm:$0xff] %v329
        %342 = vst [vmem:[#allocation2 + $0x30] sm:$0xff] %v332
        %343 = vst [vmem:[#allocation2 + $0x38] sm:$0xff] %v334
        %s344 = scalar_lea.vmem [#allocation6], 128
        %v345 = vld [vmem:[%s344] sm:$0xff]
        %v346 = vld [vmem:[%s344 + $0x8] sm:$0xff]
        %v347 = vld [vmem:[%s344 + $0x10] sm:$0xff]
        %v348 = vld [vmem:[%s344 + $0x18] sm:$0xff]
        %v349 = vld [vmem:[%s344 + $0x20] sm:$0xff]
        %v350 = vld [vmem:[%s344 + $0x28] sm:$0xff]
        %v351 = vld [vmem:[%s344 + $0x30] sm:$0xff]
        %v352 = vld [vmem:[%s344 + $0x38] sm:$0xff]
        %v353 = vld [vmem:[%s344 + $0x40] sm:$0xff]
        %v354 = vld [vmem:[%s344 + $0x48] sm:$0xff]
        %v355 = vld [vmem:[%s344 + $0x50] sm:$0xff]
        %v356 = vld [vmem:[%s344 + $0x58] sm:$0xff]
        %v357 = vld [vmem:[%s344 + $0x60] sm:$0xff]
        %v358 = vld [vmem:[%s344 + $0x68] sm:$0xff]
        %v359 = vld [vmem:[%s344 + $0x70] sm:$0xff]
        %v360 = vld [vmem:[%s344 + $0x78] sm:$0xff]
        %v361 = vpack.c.bf16 %v346, %v345
        %v362 = vpack.c.bf16 %v348, %v347
        %v363 = vpack.c.bf16 %v350, %v349
        %v364 = vpack.c.bf16 %v352, %v351
        %v365 = vpack.c.bf16 %v354, %v353
        %v366 = vpack.c.bf16 %v356, %v355
        %v367 = vpack.c.bf16 %v358, %v357
        %v368 = vpack.c.bf16 %v360, %v359
        %369 = vmatpush.bf16.msra.mxu0 %v368
        %370 = vmatpush.bf16.msra.mxu0 %v367
        %371 = vmatpush.bf16.msra.mxu0 %v366
        %372 = vmatpush.bf16.msra.mxu0 %v365
        %373 = vmatpush.bf16.msra.mxu0 %v364
        %374 = vmatpush.bf16.msra.mxu0 %v363
        %375 = vmatpush.bf16.msra.mxu0 %v362
        %376 = vmatpush.bf16.msra.mxu0 %v361
        %377 = vmatmul.bf16.gmra.mxu0 %v299
        %v378 = vpop.f32.mrf.mxu0
        %v379 = vadd.f32 0.0, %v378
        %v380 = vpop.f32.mrf.mxu0
        %v381 = vadd.f32 0.0, %v380
        %382 = vmatmul.bf16.gmra.mxu0 %v300
        %v383 = vpop.f32.mrf.mxu0
        %v384 = vadd.f32 0.0, %v383
        %v385 = vpop.f32.mrf.mxu0
        %v386 = vadd.f32 0.0, %v385
        %387 = vmatmul.bf16.gmra.mxu0 %v301
        %v388 = vpop.f32.mrf.mxu0
        %v389 = vadd.f32 0.0, %v388
        %v390 = vpop.f32.mrf.mxu0
        %v391 = vadd.f32 0.0, %v390
        %392 = vmatmul.bf16.gmra.mxu0 %v302
        %v393 = vpop.f32.mrf.mxu0
        %v394 = vadd.f32 0.0, %v393
        %v395 = vpop.f32.mrf.mxu0
        %v396 = vadd.f32 0.0, %v395
        %397 = vdwg.mxu0
        %s398 = scalar_lea.vmem [#allocation2], 64
        %399 = vst [vmem:[%s398] sm:$0xff] %v379
        %400 = vst [vmem:[%s398 + $0x8] sm:$0xff] %v381
        %401 = vst [vmem:[%s398 + $0x10] sm:$0xff] %v384
        %402 = vst [vmem:[%s398 + $0x18] sm:$0xff] %v386
        %403 = vst [vmem:[%s398 + $0x20] sm:$0xff] %v389
        %404 = vst [vmem:[%s398 + $0x28] sm:$0xff] %v391
        %405 = vst [vmem:[%s398 + $0x30] sm:$0xff] %v394
        %406 = vst [vmem:[%s398 + $0x38] sm:$0xff] %v396
        %v407 = vld [vmem:[#allocation2] sm:$0xff]
        %v408 = vld [vmem:[#allocation2 + $0x8] sm:$0xff]
        %v409 = vld [vmem:[#allocation2 + $0x10] sm:$0xff]
        %v410 = vld [vmem:[#allocation2 + $0x18] sm:$0xff]
        %v411 = vld [vmem:[#allocation2 + $0x20] sm:$0xff]
        %v412 = vld [vmem:[#allocation2 + $0x28] sm:$0xff]
        %v413 = vld [vmem:[#allocation2 + $0x30] sm:$0xff]
        %v414 = vld [vmem:[#allocation2 + $0x38] sm:$0xff]
        %v415 = vld [vmem:[#allocation2 + $0x40] sm:$0xff]
        %v416 = vld [vmem:[#allocation2 + $0x48] sm:$0xff]
        %v417 = vld [vmem:[#allocation2 + $0x50] sm:$0xff]
        %v418 = vld [vmem:[#allocation2 + $0x58] sm:$0xff]
        %v419 = vld [vmem:[#allocation2 + $0x60] sm:$0xff]
        %v420 = vld [vmem:[#allocation2 + $0x68] sm:$0xff]
        %v421 = vld [vmem:[#allocation2 + $0x70] sm:$0xff]
        %v422 = vld [vmem:[#allocation2 + $0x78] sm:$0xff]
        %v423 = vpack.c.bf16 %v408, %v407
        %v424 = vpack.c.bf16 %v410, %v409
        %v425 = vpack.c.bf16 %v412, %v411
        %v426 = vpack.c.bf16 %v414, %v413
        %v427 = vpack.c.bf16 %v416, %v415
        %v428 = vpack.c.bf16 %v418, %v417
        %v429 = vpack.c.bf16 %v420, %v419
        %v430 = vpack.c.bf16 %v422, %v421
        %v431 = vld [vmem:[#allocation8] sm:$0xf]
        %v432 = vld [vmem:[#allocation8 + $0x4] sm:$0xf]
        %v433 = vld [vmem:[#allocation8 + $0x8] sm:$0xf]
        %v434 = vld [vmem:[#allocation8 + $0xc] sm:$0xf]
        %v435 = vld [vmem:[#allocation8 + $0x10] sm:$0xf]
        %v436 = vld [vmem:[#allocation8 + $0x14] sm:$0xf]
        %v437 = vld [vmem:[#allocation8 + $0x18] sm:$0xf]
        %v438 = vld [vmem:[#allocation8 + $0x1c] sm:$0xf]
        %v439 = vld [vmem:[#allocation8 + $0x20] sm:$0xf]
        %v440 = vld [vmem:[#allocation8 + $0x24] sm:$0xf]
        %v441 = vld [vmem:[#allocation8 + $0x28] sm:$0xf]
        %v442 = vld [vmem:[#allocation8 + $0x2c] sm:$0xf]
        %v443 = vld [vmem:[#allocation8 + $0x30] sm:$0xf]
        %v444 = vld [vmem:[#allocation8 + $0x34] sm:$0xf]
        %v445 = vld [vmem:[#allocation8 + $0x38] sm:$0xf]
        %v446 = vld [vmem:[#allocation8 + $0x3c] sm:$0xf]
        %v463 = vunpack.c.l.b16 %v431
        %v464 = vunpack.c.l.b16 %v432
        %v465 = vunpack.c.l.b16 %v433
        %v466 = vunpack.c.l.b16 %v434
        %v467 = vunpack.c.l.b16 %v435
        %v468 = vunpack.c.l.b16 %v436
        %v469 = vunpack.c.l.b16 %v437
        %v470 = vunpack.c.l.b16 %v438
        %v471 = vunpack.c.l.b16 %v439
        %v472 = vunpack.c.l.b16 %v440
        %v473 = vunpack.c.l.b16 %v441
        %v474 = vunpack.c.l.b16 %v442
        %v475 = vunpack.c.l.b16 %v443
        %v476 = vunpack.c.l.b16 %v444
        %v477 = vunpack.c.l.b16 %v445
        %v478 = vunpack.c.l.b16 %v446
        %v479 = vpack.c.b16 %v464, %v463
        %v480 = vpack.c.b16 %v466, %v465
        %v481 = vpack.c.b16 %v468, %v467
        %v482 = vpack.c.b16 %v470, %v469
        %v483 = vpack.c.b16 %v472, %v471
        %v484 = vpack.c.b16 %v474, %v473
        %v485 = vpack.c.b16 %v476, %v475
        %v486 = vpack.c.b16 %v478, %v477
        %495 = vmatpush.bf16.msra.mxu0 %v486
        %496 = vmatpush.bf16.msra.mxu0 %v485
        %497 = vmatpush.bf16.msra.mxu0 %v484
        %498 = vmatpush.bf16.msra.mxu0 %v483
        %499 = vmatpush.bf16.msra.mxu0 %v482
        %500 = vmatpush.bf16.msra.mxu0 %v481
        %501 = vmatpush.bf16.msra.mxu0 %v480
        %502 = vmatpush.bf16.msra.mxu0 %v479
        %503 = vmatmul.bf16.gmra.mxu0 %v423
        %v504 = vpop.f32.mrf.mxu0
        %v505 = vadd.f32 0.0, %v504
        %v506 = vpop.f32.mrf.mxu0
        %v507 = vadd.f32 0.0, %v506
        %508 = vmatmul.bf16.gmra.mxu0 %v424
        %v509 = vpop.f32.mrf.mxu0
        %v510 = vadd.f32 0.0, %v509
        %v511 = vpop.f32.mrf.mxu0
        %v512 = vadd.f32 0.0, %v511
        %513 = vmatmul.bf16.gmra.mxu0 %v425
        %v514 = vpop.f32.mrf.mxu0
        %v515 = vadd.f32 0.0, %v514
        %v516 = vpop.f32.mrf.mxu0
        %v517 = vadd.f32 0.0, %v516
        %518 = vmatmul.bf16.gmra.mxu0 %v426
        %v519 = vpop.f32.mrf.mxu0
        %v520 = vadd.f32 0.0, %v519
        %v521 = vpop.f32.mrf.mxu0
        %v522 = vadd.f32 0.0, %v521
        %523 = vmatmul.bf16.gmra.mxu0 %v427
        %v524 = vpop.f32.mrf.mxu0
        %v525 = vadd.f32 0.0, %v524
        %v526 = vpop.f32.mrf.mxu0
        %v527 = vadd.f32 0.0, %v526
        %528 = vmatmul.bf16.gmra.mxu0 %v428
        %v529 = vpop.f32.mrf.mxu0
        %v530 = vadd.f32 0.0, %v529
        %v531 = vpop.f32.mrf.mxu0
        %v532 = vadd.f32 0.0, %v531
        %533 = vmatmul.bf16.gmra.mxu0 %v429
        %v534 = vpop.f32.mrf.mxu0
        %v535 = vadd.f32 0.0, %v534
        %v536 = vpop.f32.mrf.mxu0
        %v537 = vadd.f32 0.0, %v536
        %538 = vmatmul.bf16.gmra.mxu0 %v430
        %v539 = vpop.f32.mrf.mxu0
        %v540 = vadd.f32 0.0, %v539
        %v541 = vpop.f32.mrf.mxu0
        %v542 = vadd.f32 0.0, %v541
        %543 = vdwg.mxu0
        %544 = vst [vmem:[%s246] sm:$0xff] %v505
        %545 = vst [vmem:[%s246 + $0x8] sm:$0xff] %v507
        %546 = vst [vmem:[%s246 + $0x10] sm:$0xff] %v510
        %547 = vst [vmem:[%s246 + $0x18] sm:$0xff] %v512
        %548 = vst [vmem:[%s246 + $0x20] sm:$0xff] %v515
        %549 = vst [vmem:[%s246 + $0x28] sm:$0xff] %v517
        %550 = vst [vmem:[%s246 + $0x30] sm:$0xff] %v520
        %551 = vst [vmem:[%s246 + $0x38] sm:$0xff] %v522
        %552 = vst [vmem:[%s246 + $0x40] sm:$0xff] %v525
        %553 = vst [vmem:[%s246 + $0x48] sm:$0xff] %v527
        %554 = vst [vmem:[%s246 + $0x50] sm:$0xff] %v530
        %555 = vst [vmem:[%s246 + $0x58] sm:$0xff] %v532
        %556 = vst [vmem:[%s246 + $0x60] sm:$0xff] %v535
        %557 = vst [vmem:[%s246 + $0x68] sm:$0xff] %v537
        %558 = vst [vmem:[%s246 + $0x70] sm:$0xff] %v540
        %559 = vst [vmem:[%s246 + $0x78] sm:$0xff] %v542
        %s560 = sand.u32 %s116, 1
        %s561 = scalar_lea.sflag [#allocation5], %s560
        %s562 = sand.u32 %s116, 1
        %s563 = smul.addr %s562, 128
        %s564 = scalar_lea.vmem [#allocation9], %s563
        // Predicated region
        $region45: #{gauss_smooth.1} parent=31 // pred_check
          %p565 = pneg %p126
        $region46: #{gauss_smooth.1} parent=31 // pred_check_branch
          %567 = sbr.rel (%p565) target = $region48
        $region47: #{gauss_smooth.1} parent=31 // pred_region
          #allocation11 [shape = 'u32[6]{0}', space=smem, size = 0x18, scoped, tag = 'DMA stride descriptor']
          %s568 = smul.u32 2, %s25
          %s569 = smul.u32 8, %s26
          %571 = vsyncadd %s561, 0
          %s572 = smul.addr %s568, 16
          %s573 = sadd.s32 %s569, %s572
          %s574 = smul.addr %s573, 8
          %s575 = scalar_lea.hbm %s3, %s574
          %s577 = sshll.u32 1, 14
          %s578 = sxor.u32 4294967295, %s577
          %s581 = sshll.u32 7, 18
          %s582 = sxor.u32 4294967295, %s581
          %s583 = sand.u32 0, %s582
          %s585 = sor.u32 %s583, 0
          %s586 = sshll.u32 %s564, 4
          %s587 = int_to_ptr.vmem [resolvable:$true] %s586
          %s588 = sshll.u32 %s575, 4
          %s589 = int_to_ptr.hbm [resolvable:$true] %s588
          %595 = sst [smem:[#allocation11]] 1024
          %s596 = scalar_lea.smem [#allocation11], 1
          %597 = sst [smem:[%s596]] 2048
          %s598 = scalar_lea.smem [#allocation11], 2
          %599 = sst [smem:[%s598]] 8
          %s600 = scalar_lea.smem [#allocation11], 3
          %601 = sst [smem:[%s600]] 128
          %s602 = scalar_lea.smem [#allocation11], 4
          %603 = sst [smem:[%s602]] 128
          %s604 = scalar_lea.smem [#allocation11], 5
          %605 = sst [smem:[%s604]] 8
          %607 = dma.general %s587, 2048, %s589, %s561, [#allocation10], [#allocation11], %s585, 0
        $region48: #{gauss_smooth.1} parent=31 // pred_fallthru
          _
      $region32: #{gauss_smooth.1} parent=5 // pred_fallthru
        _
      %p608 = scmp.le.s32.totalorder 2, %s16
      // Predicated region
      $region49: #{gauss_smooth.1} parent=5 // pred_check
        %p609 = pneg %p608
      $region50: #{gauss_smooth.1} parent=5 // pred_check_branch
        %611 = sbr.rel (%p609) target = $region52
      $region51: #{gauss_smooth.1} parent=5 // pred_region
        %s612 = ssub.s32 %s16, 2
        // Predicated region
        $region53: #{gauss_smooth.1} parent=51 // pred_check
          %p613 = pneg %p132
        $region54: #{gauss_smooth.1} parent=51 // pred_check_branch
          %615 = sbr.rel (%p613) target = $region56
        $region55: #{gauss_smooth.1} parent=51 // pred_region
          %s616 = sand.u32 %s117, 1
          %s617 = scalar_lea.sflag [#allocation5], %s616
          %s618 = sand.u32 %s117, 1
          %s619 = smul.addr %s618, 128
          %s620 = scalar_lea.vmem [#allocation9], %s619
          %622 = dma.done %s617, 2048
        $region56: #{gauss_smooth.1} parent=51 // pred_fallthru
          _
      $region52: #{gauss_smooth.1} parent=5 // pred_fallthru
        _
    $region6: #{gauss_smooth.1} parent=1 // loop_footer
      %s20 = sadd.s32 1, %s16
    $region7: #{gauss_smooth.1} parent=1 // loop_footer_branch
      %15 = sbr.rel target = $region3
    $region8: #{gauss_smooth.1} parent=1 // loop_exit
      _
    %623 = vsyncpa [#allocation4], 1
    %s624 = scalar_lea.sflag [#allocation4], 1
    %625 = vsyncpa %s624, 1
    %626 = vsyncpa [#allocation7], 1
    %627 = vsyncpa [#allocation5], 1
    %s628 = scalar_lea.sflag [#allocation5], 1
    %629 = vsyncpa %s628, 1

</llo_original>
